<compile_context>
chip_gen: v6e
topology: v6e:2x2x1
jax: 0.10.0
libtpu: 0.0.40
codegen_flags: <defaults>
</compile_context>

<pallas_src>
import functools

import jax
import jax.numpy as jnp
from jax.experimental import pallas as pl
from jax.experimental.pallas import tpu as pltpu


def _bev_gather_kernel(f_ref, ix_ref, iy_ref, o_ref, acc_ref, *, W, h_tile, matmul_dtype):
    """Grid = (N, K_tiles, HW_tiles); HW_tiles is the trailing reduction axis.

    f_ref  : (1, C, h_tile*W) feature-map row-tile (rows [hw*h_tile, hw*h_tile+h_tile))
    ix_ref : (1, 1, Kb) fractional width  (x) pixel coordinate for this K tile
    iy_ref : (1, 1, Kb) fractional height (y) pixel coordinate for this K tile
    o_ref  : (1, C, Kb) gathered features (written on last HW tile)
    acc_ref: (C, Kb) f32 accumulator scratch
    """
    hw = pl.program_id(2)
    n_hw = pl.num_programs(2)
    Kb = ix_ref.shape[-1]

    @pl.when(hw == 0)
    def _():
        acc_ref[...] = jnp.zeros_like(acc_ref)

    ix = ix_ref[0]                       # (1, Kb) f32
    iy = iy_ref[0]                       # (1, Kb) f32

    x0f = jnp.floor(ix)
    y0f = jnp.floor(iy)
    wx1 = ix - x0f
    wx0 = 1.0 - wx1
    wy1 = iy - y0f
    wy0 = 1.0 - wy1
    x0 = x0f.astype(jnp.int32)
    y0 = y0f.astype(jnp.int32)
    x1 = x0 + 1
    y1 = y0 + 1

    # Separable one-hot weights built from *integer* compares.  Out-of-range
    # corners (e.g. x1 == W, or clamped-past-edge points) simply never match the
    # bounded iota, which reproduces grid_sample's zeros padding exactly.
    h0 = hw * h_tile
    iota_h = jax.lax.broadcasted_iota(jnp.int32, (h_tile, Kb), 0) + h0   # absolute rows
    iota_w = jax.lax.broadcasted_iota(jnp.int32, (W, Kb), 0)

    oy = (jnp.where(iota_h == y0, wy0, 0.0) +
          jnp.where(iota_h == y1, wy1, 0.0))                              # (h_tile, Kb)
    ox = (jnp.where(iota_w == x0, wx0, 0.0) +
          jnp.where(iota_w == x1, wx1, 0.0))                              # (W, Kb)

    # One broadcast multiply instead of 4 full-(HW,K) one-hot builds.
    # (W is a multiple of 8 in practice, so this reshape is tile-aligned.)
    wmat = (oy[:, None, :] * ox[None, :, :]).reshape(h_tile * W, Kb)      # (HW_tile, Kb)

    f = f_ref[0]                                                          # (C, HW_tile)
    acc_ref[...] += jnp.dot(f.astype(matmul_dtype), wmat.astype(matmul_dtype),
                            preferred_element_type=jnp.float32)

    @pl.when(hw == n_hw - 1)
    def _():
        o_ref[0] = acc_ref[...].astype(o_ref.dtype)


def _compute_pixel_coords(keypoint_xyz, voxel_offset, base_voxel_size, strides, H, W):
    """Plain-JAX glue mirroring compute_bev_indices + grid_sample unnormalization."""
    pixel_offset = voxel_offset[:2]
    base_pixel_size = base_voxel_size[:2]
    stride = float(strides[-1])

    idx = keypoint_xyz[:, :, :2] - pixel_offset                # (N, K, 2), order (x, y)
    idx = idx / (base_pixel_size * stride)
    image_dims = jnp.array([W - 1, H - 1], jnp.float32)
    idx = jnp.minimum(jnp.maximum(idx, 0.0), image_dims)       # clamp(min=0), min(dims)
    # NOTE: reference divides by (dims - 1) but unnormalizes with *(dims)/2 via
    # align_corners=True; we reproduce that quirk exactly (edge points land just
    # past W-1/H-1 and those corners are zero-padded).
    idx = 2.0 * (idx / (image_dims - 1.0)) - 1.0
    grid = idx[..., ::-1]                                      # .flip(3)

    gx = grid[..., 0]                                          # grid_sample x -> width
    gy = grid[..., 1]                                          # grid_sample y -> height
    ix = (gx + 1.0) * 0.5 * (W - 1)                            # (N, K)
    iy = (gy + 1.0) * 0.5 * (H - 1)                            # (N, K)
    return ix, iy


def _auto_h_tile(H, W, C, k_block, feat_bytes, budget_bytes):
    """Largest row-tile (divisor of H) whose working set fits the VMEM budget,
    subject to the (.,128) constraint on the flattened-HW block dimension."""
    candidates = [d for d in range(H, 0, -1)
                  if H % d == 0 and ((d * W) % 128 == 0 or d == H)]
    for d in candidates:
        hw_tile = d * W
        need = (2 * C * hw_tile * feat_bytes        # double-buffered feature block
                + hw_tile * k_block * 4             # wmat intermediate
                + 2 * C * k_block * 4)              # f32 accumulator + out block
        if need <= budget_bytes:
            return d
    return candidates[-1]


def bev_feature_gather(feature_map, keypoint_xyz, voxel_offset, base_voxel_size,
                       strides, *, hw_tile_rows=None, k_block=None,
                       matmul_dtype=None, vmem_limit_bytes=48 * 1024 * 1024):
    N, C, H, W = feature_map.shape
    K = keypoint_xyz.shape[1]

    ix, iy = _compute_pixel_coords(keypoint_xyz, voxel_offset, base_voxel_size,
                                   strides, H, W)

    # Lane-dense K: pad to a multiple of 128 so output stores are unmasked and
    # MXU columns are not idle. Padded columns gather (0,0) and are sliced off.
    K_pad = ((K + 127) // 128) * 128
    if K_pad == 0:
        K_pad = 128
    if K_pad != K:
        ix = jnp.pad(ix, ((0, 0), (0, K_pad - K)))
        iy = jnp.pad(iy, ((0, 0), (0, K_pad - K)))

    if k_block is None:
        k_block = 128
        for cand in (512, 256, 128):
            if K_pad % cand == 0:
                k_block = cand
                break
    assert K_pad % k_block == 0

    if matmul_dtype is None:
        matmul_dtype = feature_map.dtype   # pass jnp.bfloat16 on v6e/v7x for 2x MXU rate

    if hw_tile_rows is None:
        feat_bytes = jnp.dtype(matmul_dtype).itemsize
        hw_tile_rows = _auto_h_tile(H, W, C, k_block, feat_bytes,
                                    budget_bytes=(3 * vmem_limit_bytes) // 4)
    assert H % hw_tile_rows == 0
    hw_tile = hw_tile_rows * W
    assert hw_tile % 128 == 0 or hw_tile == H * W

    f_flat = feature_map.reshape(N, C, H * W)
    ix3 = ix.reshape(N, 1, K_pad)
    iy3 = iy.reshape(N, 1, K_pad)

    grid = (N, K_pad // k_block, H // hw_tile_rows)

    kernel = functools.partial(_bev_gather_kernel, W=W, h_tile=hw_tile_rows,
                               matmul_dtype=matmul_dtype)
    out = pl.pallas_call(
        kernel,
        out_shape=jax.ShapeDtypeStruct((N, C, K_pad), feature_map.dtype),
        grid_spec=pltpu.PrefetchScalarGridSpec(
            num_scalar_prefetch=0,
            grid=grid,
            in_specs=[
                pl.BlockSpec((1, C, hw_tile), lambda n, kt, hw: (n, 0, hw)),
                pl.BlockSpec((1, 1, k_block), lambda n, kt, hw: (n, 0, kt)),
                pl.BlockSpec((1, 1, k_block), lambda n, kt, hw: (n, 0, kt)),
            ],
            out_specs=pl.BlockSpec((1, C, k_block), lambda n, kt, hw: (n, 0, kt)),
            scratch_shapes=[pltpu.VMEM((C, k_block), jnp.float32)],
        ),
        compiler_params=pltpu.CompilerParams(
            dimension_semantics=("parallel", "parallel", "arbitrary"),
            vmem_limit_bytes=vmem_limit_bytes,
        ),
    )(f_flat, ix3, iy3)
    return out[:, :, :K]


def _reference_gather(feature_map, ix, iy):
    """Pure-JAX bilinear grid_sample (align_corners=True, zeros padding) for checking."""
    N, C, H, W = feature_map.shape
    x0 = jnp.floor(ix)
    x1 = x0 + 1.0
    y0 = jnp.floor(iy)
    y1 = y0 + 1.0
    wx1 = ix - x0
    wx0 = 1.0 - wx1
    wy1 = iy - y0
    wy0 = 1.0 - wy1

    def corner(xc, yc, w):
        valid = (xc >= 0) & (xc <= W - 1) & (yc >= 0) & (yc <= H - 1)
        xi = jnp.clip(xc, 0, W - 1).astype(jnp.int32)
        yi = jnp.clip(yc, 0, H - 1).astype(jnp.int32)
        vals = jax.vmap(lambda fm, yy, xx: fm[:, yy, xx])(feature_map, yi, xi)  # (N,C,K)
        return vals * (w * valid)[:, None, :]

    return (corner(x0, y0, wx0 * wy0) + corner(x1, y0, wx1 * wy0) +
            corner(x0, y1, wx0 * wy1) + corner(x1, y1, wx1 * wy1))


if __name__ == "__main__":
    # Deterministic "config" (no learnable weights in this module).
    voxel_offset = jnp.array([0.0, -40.0, -3.0], jnp.float32)
    base_voxel_size = jnp.array([0.05, 0.05, 0.1], jnp.float32)
    strides = (1, 2, 4, 8)  # cfg.STRIDES; only STRIDES[-1] is used

    N, C, H, W, K = 2, 4, 16, 16, 8
    key = jax.random.PRNGKey(0)
    k1, k2 = jax.random.split(key)

    feature_map = jax.random.normal(k1, (N, C, H, W), jnp.float32)
    # keypoints roughly inside the BEV extent covered by the (H, W) map
    extent = jnp.array([W, H], jnp.float32) * base_voxel_size[:2] * strides[-1]
    xy = voxel_offset[:2] + jax.random.uniform(k2, (N, K, 2), jnp.float32) * extent * 1.1
    z = jnp.zeros((N, K, 1), jnp.float32)
    keypoint_xyz = jnp.concatenate([xy, z], axis=-1)  # (N, K, 3)

    # f32 path; hw_tile_rows=8 forces 2 HW reduction tiles to exercise the accumulator.
    out = bev_feature_gather(feature_map, keypoint_xyz, voxel_offset,
                             base_voxel_size, strides, hw_tile_rows=8)
    out = jax.block_until_ready(out)
    assert out.shape == (N, C, K), out.shape

    # Cross-check against a pure-JAX grid_sample reference.
    ix, iy = _compute_pixel_coords(keypoint_xyz, voxel_offset, base_voxel_size,
                                   strides, H, W)
    ref = _reference_gather(feature_map, ix, iy)
    assert jnp.allclose(out, ref, rtol=1e-5, atol=1e-4), float(jnp.max(jnp.abs(out - ref)))

    # bf16-operand MXU path (f32 accumulation), as recommended for v6e/v7x.
    out_bf16 = bev_feature_gather(feature_map, keypoint_xyz, voxel_offset,
                                  base_voxel_size, strides, hw_tile_rows=8,
                                  matmul_dtype=jnp.bfloat16)
    out_bf16 = jax.block_until_ready(out_bf16)
    assert jnp.allclose(out_bf16, ref, rtol=3e-2, atol=3e-2), \
        float(jnp.max(jnp.abs(out_bf16 - ref)))

    print("KERNEL_OK")
</pallas_src>

<mosaic_0001>
module attributes {stable_mosaic.version = 11 : i64} {
  func.func @_bev_gather_kernel(%arg0: i32, %arg1: i32, %arg2: i32, %arg3: memref<1x4x128xf32, #tpu.memory_space<vmem>>, %arg4: memref<1x1x128xf32, #tpu.memory_space<vmem>>, %arg5: memref<1x1x128xf32, #tpu.memory_space<vmem>>, %arg6: memref<1x4x128xf32, #tpu.memory_space<vmem>>, %arg7: memref<4x128xf32, #tpu.memory_space<vmem>>) attributes {dimension_semantics = [#tpu.dimension_semantics<parallel>, #tpu.dimension_semantics<parallel>, #tpu.dimension_semantics<arbitrary>], iteration_bounds = array<i64: 2, 1, 2>, scalar_prefetch = 0 : i64, scratch_operands = 1 : i64, tpu.core_type = #tpu.core_type<tc>, window_params = [{transform_indices = @transform_0, window_bounds = array<i64: 1, 4, 128>}, {transform_indices = @transform_1, window_bounds = array<i64: 1, 1, 128>}, {transform_indices = @transform_2, window_bounds = array<i64: 1, 1, 128>}, {transform_indices = @transform_3, window_bounds = array<i64: 1, 4, 128>}]} {
    %c0_i32 = arith.constant 0 : i32
    %0 = arith.cmpi eq, %arg2, %c0_i32 : i32
    %1 = arith.extui %0 : i1 to i32
    %c0_i32_0 = arith.constant 0 : i32
    %2 = arith.cmpi ne, %1, %c0_i32_0 : i32
    scf.if %2 {
      %cst_22 = arith.constant 0.000000e+00 : f32
      %67 = vector.broadcast %cst_22 : f32 to vector<4x128xf32>
      %c0_23 = arith.constant 0 : index
      %c0_24 = arith.constant 0 : index
      %68 = vector.load %arg7[%c0_23, %c0_24] : memref<4x128xf32, #tpu.memory_space<vmem>>, vector<4x128xf32>
      tpu.vector_store %arg7[%c0_23, %c0_24], %67 {strides = array<i32>} : memref<4x128xf32, #tpu.memory_space<vmem>>, vector<4x128xf32>,
    } else {
    }
    %c0 = arith.constant 0 : index
    %c0_1 = arith.constant 0 : index
    %c0_2 = arith.constant 0 : index
    %3 = vector.load %arg4[%c0, %c0_1, %c0_2] : memref<1x1x128xf32, #tpu.memory_space<vmem>>, vector<1x1x128xf32>
    %4 = vector.shape_cast %3 : vector<1x1x128xf32> to vector<1x128xf32>
    %c0_3 = arith.constant 0 : index
    %c0_4 = arith.constant 0 : index
    %c0_5 = arith.constant 0 : index
    %5 = vector.load %arg5[%c0_3, %c0_4, %c0_5] : memref<1x1x128xf32, #tpu.memory_space<vmem>>, vector<1x1x128xf32>
    %6 = vector.shape_cast %5 : vector<1x1x128xf32> to vector<1x128xf32>
    %7 = math.floor %4 : vector<1x128xf32>
    %8 = math.floor %6 : vector<1x128xf32>
    %9 = arith.subf %4, %7 : vector<1x128xf32>
    %cst = arith.constant 1.000000e+00 : f32
    %10 = vector.broadcast %cst : f32 to vector<1x128xf32>
    %11 = arith.subf %10, %9 : vector<1x128xf32>
    %12 = arith.subf %6, %8 : vector<1x128xf32>
    %cst_6 = arith.constant 1.000000e+00 : f32
    %13 = vector.broadcast %cst_6 : f32 to vector<1x128xf32>
    %14 = arith.subf %13, %12 : vector<1x128xf32>
    %15 = arith.fptosi %7 : vector<1x128xf32> to vector<1x128xi32>
    %16 = arith.fptosi %8 : vector<1x128xf32> to vector<1x128xi32>
    %c1_i32 = arith.constant 1 : i32
    %17 = vector.broadcast %c1_i32 : i32 to vector<1x128xi32>
    %18 = arith.addi %15, %17 : vector<1x128xi32>
    %c1_i32_7 = arith.constant 1 : i32
    %19 = vector.broadcast %c1_i32_7 : i32 to vector<1x128xi32>
    %20 = arith.addi %16, %19 : vector<1x128xi32>
    %c8_i32 = arith.constant 8 : i32
    %21 = arith.muli %arg2, %c8_i32 : i32
    %22 = tpu.iota {dimensions = array<i32: 0>} : vector<8x128xi32>
    %23 = vector.broadcast %21 : i32 to vector<8x128xi32>
    %24 = arith.addi %22, %23 : vector<8x128xi32>
    %25 = tpu.iota {dimensions = array<i32: 0>} : vector<16x128xi32>
    %26 = vector.broadcast %16 : vector<1x128xi32> to vector<8x128xi32>
    %27 = arith.cmpi eq, %24, %26 : vector<8x128xi32>
    %cst_8 = arith.constant 0.000000e+00 : f32
    %28 = vector.shape_cast %14 : vector<1x128xf32> to vector<1x128xf32>
    %29 = vector.broadcast %28 : vector<1x128xf32> to vector<8x128xf32>
    %30 = vector.broadcast %cst_8 : f32 to vector<8x128xf32>
    %31 = arith.select %27, %29, %30 : vector<8x128xi1>, vector<8x128xf32>
    %32 = vector.broadcast %20 : vector<1x128xi32> to vector<8x128xi32>
    %33 = arith.cmpi eq, %24, %32 : vector<8x128xi32>
    %cst_9 = arith.constant 0.000000e+00 : f32
    %34 = vector.shape_cast %12 : vector<1x128xf32> to vector<1x128xf32>
    %35 = vector.broadcast %34 : vector<1x128xf32> to vector<8x128xf32>
    %36 = vector.broadcast %cst_9 : f32 to vector<8x128xf32>
    %37 = arith.select %33, %35, %36 : vector<8x128xi1>, vector<8x128xf32>
    %38 = arith.addf %31, %37 : vector<8x128xf32>
    %39 = vector.broadcast %15 : vector<1x128xi32> to vector<16x128xi32>
    %40 = arith.cmpi eq, %25, %39 : vector<16x128xi32>
    %cst_10 = arith.constant 0.000000e+00 : f32
    %41 = vector.shape_cast %11 : vector<1x128xf32> to vector<1x128xf32>
    %42 = vector.broadcast %41 : vector<1x128xf32> to vector<16x128xf32>
    %43 = vector.broadcast %cst_10 : f32 to vector<16x128xf32>
    %44 = arith.select %40, %42, %43 : vector<16x128xi1>, vector<16x128xf32>
    %45 = vector.broadcast %18 : vector<1x128xi32> to vector<16x128xi32>
    %46 = arith.cmpi eq, %25, %45 : vector<16x128xi32>
    %cst_11 = arith.constant 0.000000e+00 : f32
    %47 = vector.shape_cast %9 : vector<1x128xf32> to vector<1x128xf32>
    %48 = vector.broadcast %47 : vector<1x128xf32> to vector<16x128xf32>
    %49 = vector.broadcast %cst_11 : f32 to vector<16x128xf32>
    %50 = arith.select %46, %48, %49 : vector<16x128xi1>, vector<16x128xf32>
    %51 = arith.addf %44, %50 : vector<16x128xf32>
    %52 = vector.shape_cast %38 : vector<8x128xf32> to vector<8x1x128xf32>
    %53 = vector.shape_cast %51 : vector<16x128xf32> to vector<1x16x128xf32>
    %54 = vector.broadcast %52 : vector<8x1x128xf32> to vector<8x16x128xf32>
    %55 = vector.broadcast %53 : vector<1x16x128xf32> to vector<8x16x128xf32>
    %56 = arith.mulf %54, %55 : vector<8x16x128xf32>
    %57 = vector.shape_cast %56 : vector<8x16x128xf32> to vector<128x128xf32>
    %c0_12 = arith.constant 0 : index
    %c0_13 = arith.constant 0 : index
    %c0_14 = arith.constant 0 : index
    %58 = vector.load %arg3[%c0_12, %c0_13, %c0_14] : memref<1x4x128xf32, #tpu.memory_space<vmem>>, vector<1x4x128xf32>
    %59 = vector.shape_cast %58 : vector<1x4x128xf32> to vector<4x128xf32>
    %c0_15 = arith.constant 0 : index
    %c0_16 = arith.constant 0 : index
    %60 = vector.load %arg7[%c0_15, %c0_16] : memref<4x128xf32, #tpu.memory_space<vmem>>, vector<4x128xf32>
    %cst_17 = arith.constant dense<0.000000e+00> : vector<4x128xf32>
    %61 = tpu.matmul %59, %57, %cst_17 {dimension_numbers = #tpu.dot_dimension_numbers<[1], [0], [0], [1], [0, 0, 1, 1], [], []>} : vector<4x128xf32>, vector<128x128xf32>, vector<4x128xf32> -> vector<4x128xf32>
    %62 = arith.addf %60, %61 : vector<4x128xf32>
    %c0_18 = arith.constant 0 : index
    %c0_19 = arith.constant 0 : index
    %63 = vector.load %arg7[%c0_18, %c0_19] : memref<4x128xf32, #tpu.memory_space<vmem>>, vector<4x128xf32>
    tpu.vector_store %arg7[%c0_18, %c0_19], %62 {strides = array<i32>} : memref<4x128xf32, #tpu.memory_space<vmem>>, vector<4x128xf32>,
    %c1_i32_20 = arith.constant 1 : i32
    %64 = arith.cmpi eq, %arg2, %c1_i32_20 : i32
    %65 = arith.extui %64 : i1 to i32
    %c0_i32_21 = arith.constant 0 : i32
    %66 = arith.cmpi ne, %65, %c0_i32_21 : i32
    scf.if %66 {
      %c0_22 = arith.constant 0 : index
      %c0_23 = arith.constant 0 : index
      %67 = vector.load %arg7[%c0_22, %c0_23] : memref<4x128xf32, #tpu.memory_space<vmem>>, vector<4x128xf32>
      %c0_24 = arith.constant 0 : index
      %c0_25 = arith.constant 0 : index
      %c0_26 = arith.constant 0 : index
      %68 = vector.load %arg6[%c0_24, %c0_25, %c0_26] : memref<1x4x128xf32, #tpu.memory_space<vmem>>, vector<1x4x128xf32>
      %69 = vector.shape_cast %68 : vector<1x4x128xf32> to vector<4x128xf32>
      %70 = vector.shape_cast %67 : vector<4x128xf32> to vector<1x4x128xf32>
      tpu.vector_store %arg6[%c0_24, %c0_25, %c0_26], %70 {strides = array<i32>} : memref<1x4x128xf32, #tpu.memory_space<vmem>>, vector<1x4x128xf32>,
    } else {
    }
    return
  }
  func.func @transform_0(%arg0: i32, %arg1: i32, %arg2: i32) -> (i32, i32, i32) {
    %c0_i32 = arith.constant 0 : i32
    %c0_i32_0 = arith.constant 0 : i32
    return %arg0, %c0_i32, %arg2 : i32, i32, i32
  }
  func.func @transform_1(%arg0: i32, %arg1: i32, %arg2: i32) -> (i32, i32, i32) {
    %c0_i32 = arith.constant 0 : i32
    %c0_i32_0 = arith.constant 0 : i32
    return %arg0, %c0_i32, %arg1 : i32, i32, i32
  }
  func.func @transform_2(%arg0: i32, %arg1: i32, %arg2: i32) -> (i32, i32, i32) {
    %c0_i32 = arith.constant 0 : i32
    %c0_i32_0 = arith.constant 0 : i32
    return %arg0, %c0_i32, %arg1 : i32, i32, i32
  }
  func.func @transform_3(%arg0: i32, %arg1: i32, %arg2: i32) -> (i32, i32, i32) {
    %c0_i32 = arith.constant 0 : i32
    %c0_i32_0 = arith.constant 0 : i32
    return %arg0, %c0_i32, %arg1 : i32, i32, i32
  }
}

</mosaic_0001>

<llo_original>
// kernel: tpu_custom_call.1
$region0: #{tpu_custom_call.1}
  #allocation0 [shape = 'u32[]', space=smem, size = 0x4, offset = 0x4, fixed_abs, tag = 'smem constant byte address 0x4 - core index']
  #allocation1 [shape = 'u32[144,128]{1,0:T(1,128)}', space=vmem, size = 0x12000, scoped, tag = 'internal scratch']
  #allocation2 [shape = 'f32[4,128]{1,0:T(4,128)}', space=vmem, size = 0x800, scoped, tag = 'scratch operand']
  %s0 = inlined_call_operand.hbm [shape: f32[2,4,256], index: 0, kind: input, shape index: {}]
  %s1 = inlined_call_operand.hbm [shape: f32[2,1,128], index: 1, kind: input, shape index: {}]
  %s2 = inlined_call_operand.vmem [shape: f32[2,1,128], index: 2, kind: input, shape index: {}]
  %s3 = inlined_call_operand.hbm [shape: f32[2,4,128], index: 3, kind: output, shape index: {}]
  %s4 = sld [smem:[#allocation0]]
  $region61: #{tpu_custom_call.1} parent=0
    _
  %s6 = ssub.s32 1, %s4
  %s7 = scalar_select 0, %s6, %s4
  $region1: #{tpu_custom_call.1} parent=0
    #allocation3 [shape = 'u8[4096]{0}', space=vmem, size = 0x1000, scoped, tag = 'input window, operand 0']
    #allocation4 [shape = 's32[2]{0}', space=sflag, size = 0x8, scoped, tag = 'scoped memory for tpu_custom_call.1']
    #allocation5 [shape = 's32[2]{0}', space=sflag, size = 0x8, scoped, tag = 'scoped memory for tpu_custom_call.1']
    #allocation6 [shape = 'u8[1024]{0}', space=vmem, size = 0x400, scoped, tag = 'input window, operand 1']
    #allocation7 [shape = 's32[2]{0}', space=sflag, size = 0x8, scoped, tag = 'scoped memory for tpu_custom_call.1']
    #allocation8 [shape = 'u8[4096]{0}', space=vmem, size = 0x1000, scoped, tag = 'output window, operand 0']
    %8 = vsyncpa [#allocation4], 0
    %s9 = scalar_lea.sflag [#allocation4], 1
    %10 = vsyncpa %s9, 0
    %11 = vsyncpa [#allocation7], 0
    %s12 = scalar_lea.sflag [#allocation7], 1
    %13 = vsyncpa %s12, 0
    %14 = vsyncpa [#allocation5], 0
    %s15 = scalar_lea.sflag [#allocation5], 1
    %16 = vsyncpa %s15, 0
    loop: start=0, step=1, limit=6
    $region2: #{tpu_custom_call.1} parent=1 // loop_pre_header
      _
    $region3: #{tpu_custom_call.1} parent=1 // loop_header
      %s18 = sphi 0, %s22
      %p19 = scmp.ge.s32.totalorder %s18, 6
      %s25 = sphi 0, %s44
      %s26 = sphi 0, %s40
      %s27 = sphi 0, %s36
      %s28 = sphi 0, %s25
      %s29 = sphi 0, %s26
      %s30 = sphi 0, %s27
      %s31 = sphi 0, %s28
      %s32 = sphi 0, %s29
      %s33 = sphi 0, %s30
      %s49 = sphi 0, %s51
      %s52 = sphi 0, %s49
      %s53 = sphi 0, %s52
      %s69 = sphi 0, %s53
      %s77 = sphi 0, %s79
      %s80 = sphi 0, %s77
      %s81 = sphi 0, %s80
      %s97 = sphi 0, %s81
      %s105 = sphi 0, %s107
      %s108 = sphi 0, %s105
      %s109 = sphi 0, %s108
      %s125 = sphi 0, %s109
      %s133 = sphi 0, %s135
      %s136 = sphi 0, %s133
      %s137 = sphi 0, %s136
      %s153 = sphi 0, %s137
    $region4: #{tpu_custom_call.1} parent=1 // loop_header_branch
      %21 = sbr.rel (%p19) target = $region8
    $region5: #{tpu_custom_call.1} parent=1 // loop_body
      %s23 = ssub.s32 %s18, 1
      %s24 = ssub.s32 %s18, 2
      %s34 = sadd.s32 1, %s27
      %p35 = scmp.ge.s32.totalorder %s34, 2
      %s36 = scalar_select %p35, 0, %s34
      %s37 = sadd.s32 1, %s26
      %s38 = scalar_select %p35, %s37, %s26
      %p39 = scmp.ge.s32.totalorder %s38, 1
      %s40 = scalar_select %p39, 0, %s38
      %s41 = sadd.s32 1, %s25
      %s42 = scalar_select %p39, %s41, %s25
      %p43 = scmp.ge.s32.totalorder %s42, 2
      %s44 = scalar_select %p43, 0, %s42
      %s45 = ssub.s32 %s25, %s44
      %s46 = ssub.s32 %s27, %s36
      %s47 = sor.u32 %s45, %s46
      %p48 = scmp.eq.s32.totalorder %s47, 0
      %s50 = sadd.s32 %s49, 1
      %s51 = scalar_select %p48, %s49, %s50
      %p54 = pneg %p48
      %p55 = scmp.eq.s32.totalorder %s18, 3
      %p56 = por %p54, %p55
      %p57 = scmp.ne.s32.totalorder %s49, %s52
      %p58 = scmp.eq.s32.totalorder %s18, 0
      %p59 = por %p57, %p58
      %p60 = scmp.ne.s32.totalorder %s49, %s52
      %p61 = scmp.eq.s32.totalorder %s23, 3
      %p62 = por %p60, %p61
      %p63 = scmp.ne.s32.totalorder %s52, %s53
      %p64 = scmp.eq.s32.totalorder %s23, 0
      %p65 = por %p63, %p64
      %p66 = scmp.ne.s32.totalorder %s52, %s53
      %p67 = scmp.eq.s32.totalorder %s24, 3
      %p68 = por %p66, %p67
      %p70 = scmp.ne.s32.totalorder %s53, %s69
      %p71 = scmp.eq.s32.totalorder %s24, 0
      %p72 = por %p70, %p71
      %s73 = ssub.s32 %s25, %s44
      %s74 = ssub.s32 %s26, %s40
      %s75 = sor.u32 %s73, %s74
      %p76 = scmp.eq.s32.totalorder %s75, 0
      %s78 = sadd.s32 %s77, 1
      %s79 = scalar_select %p76, %s77, %s78
      %p82 = pneg %p76
      %p83 = scmp.eq.s32.totalorder %s18, 3
      %p84 = por %p82, %p83
      %p85 = scmp.ne.s32.totalorder %s77, %s80
      %p86 = scmp.eq.s32.totalorder %s18, 0
      %p87 = por %p85, %p86
      %p88 = scmp.ne.s32.totalorder %s77, %s80
      %p89 = scmp.eq.s32.totalorder %s23, 3
      %p90 = por %p88, %p89
      %p91 = scmp.ne.s32.totalorder %s80, %s81
      %p92 = scmp.eq.s32.totalorder %s23, 0
      %p93 = por %p91, %p92
      %p94 = scmp.ne.s32.totalorder %s80, %s81
      %p95 = scmp.eq.s32.totalorder %s24, 3
      %p96 = por %p94, %p95
      %p98 = scmp.ne.s32.totalorder %s81, %s97
      %p99 = scmp.eq.s32.totalorder %s24, 0
      %p100 = por %p98, %p99
      %s101 = ssub.s32 %s25, %s44
      %s102 = ssub.s32 %s26, %s40
      %s103 = sor.u32 %s101, %s102
      %p104 = scmp.eq.s32.totalorder %s103, 0
      %s106 = sadd.s32 %s105, 1
      %s107 = scalar_select %p104, %s105, %s106
      %p110 = pneg %p104
      %p111 = scmp.eq.s32.totalorder %s18, 3
      %p112 = por %p110, %p111
      %p113 = scmp.ne.s32.totalorder %s105, %s108
      %p114 = scmp.eq.s32.totalorder %s18, 0
      %p115 = por %p113, %p114
      %p116 = scmp.ne.s32.totalorder %s105, %s108
      %p117 = scmp.eq.s32.totalorder %s23, 3
      %p118 = por %p116, %p117
      %p119 = scmp.ne.s32.totalorder %s108, %s109
      %p120 = scmp.eq.s32.totalorder %s23, 0
      %p121 = por %p119, %p120
      %p122 = scmp.ne.s32.totalorder %s108, %s109
      %p123 = scmp.eq.s32.totalorder %s24, 3
      %p124 = por %p122, %p123
      %p126 = scmp.ne.s32.totalorder %s109, %s125
      %p127 = scmp.eq.s32.totalorder %s24, 0
      %p128 = por %p126, %p127
      %s129 = ssub.s32 %s25, %s44
      %s130 = ssub.s32 %s26, %s40
      %s131 = sor.u32 %s129, %s130
      %p132 = scmp.eq.s32.totalorder %s131, 0
      %s134 = sadd.s32 %s133, 1
      %s135 = scalar_select %p132, %s133, %s134
      %p138 = pneg %p132
      %p139 = scmp.eq.s32.totalorder %s18, 3
      %p140 = por %p138, %p139
      %p141 = scmp.ne.s32.totalorder %s133, %s136
      %p142 = scmp.eq.s32.totalorder %s18, 0
      %p143 = por %p141, %p142
      %p144 = scmp.ne.s32.totalorder %s133, %s136
      %p145 = scmp.eq.s32.totalorder %s23, 3
      %p146 = por %p144, %p145
      %p147 = scmp.ne.s32.totalorder %s136, %s137
      %p148 = scmp.eq.s32.totalorder %s23, 0
      %p149 = por %p147, %p148
      %p150 = scmp.ne.s32.totalorder %s136, %s137
      %p151 = scmp.eq.s32.totalorder %s24, 3
      %p152 = por %p150, %p151
      %p154 = scmp.ne.s32.totalorder %s137, %s153
      %p155 = scmp.eq.s32.totalorder %s24, 0
      %p156 = por %p154, %p155
      %p157 = scmp.le.s32.totalorder 1, %s18
      %p158 = scmp.lt.s32.totalorder %s18, 5
      %p159 = pnand %p157, %p158
      %p160 = pneg %p159
      // Predicated region
      $region9: #{tpu_custom_call.1} parent=5 // pred_check
        _
      $region10: #{tpu_custom_call.1} parent=5 // pred_check_branch
        %162 = sbr.rel (%p159) target = $region12
      $region11: #{tpu_custom_call.1} parent=5 // pred_region
        %s163 = ssub.s32 %s18, 1
      $region12: #{tpu_custom_call.1} parent=5 // pred_fallthru
        _
      %p164 = scmp.lt.s32.totalorder %s18, 4
      // Predicated region
      $region13: #{tpu_custom_call.1} parent=5 // pred_check
        %p165 = pneg %p164
      $region14: #{tpu_custom_call.1} parent=5 // pred_check_branch
        %167 = sbr.rel (%p165) target = $region16
      $region15: #{tpu_custom_call.1} parent=5 // pred_region
        // Predicated region
        $region17: #{tpu_custom_call.1} parent=15 // pred_check
          %p168 = pneg %p59
        $region18: #{tpu_custom_call.1} parent=15 // pred_check_branch
          %170 = sbr.rel (%p168) target = $region20
        $region19: #{tpu_custom_call.1} parent=15 // pred_region
          %s171 = sand.u32 %s49, 1
          %s172 = scalar_lea.sflag [#allocation4], %s171
          %s173 = sand.u32 %s49, 1
          %s174 = smul.addr %s173, 4
          %s175 = scalar_lea.vmem [#allocation3], %s174
          %s177 = ssub.s32 64, 64
          %178 = vsyncadd %s172, %s177
          %s179 = smul.addr %s25, 2
          %s180 = sadd.s32 %s27, %s179
          %s181 = smul.addr %s180, 64
          %s182 = scalar_lea.hbm %s0, %s181
          %s184 = sshll.u32 %s175, 4
          %s185 = int_to_ptr.vmem [resolvable:$true] %s184
          %187 = dma.hbm_to_vmem [thread:$0]  %s182, 64, %s185, %s172
        $region20: #{tpu_custom_call.1} parent=15 // pred_fallthru
          _
        // Predicated region
        $region21: #{tpu_custom_call.1} parent=15 // pred_check
          %p188 = pneg %p87
        $region22: #{tpu_custom_call.1} parent=15 // pred_check_branch
          %190 = sbr.rel (%p188) target = $region24
        $region23: #{tpu_custom_call.1} parent=15 // pred_region
          %s191 = sand.u32 %s77, 1
          %s192 = scalar_lea.sflag [#allocation7], %s191
          %s193 = sand.u32 %s77, 1
          %s194 = scalar_lea.vmem [#allocation6], %s193
          %s196 = ssub.s32 16, 16
          %197 = vsyncadd %s192, %s196
          %s198 = sadd.s32 %s26, %s25
          %s199 = smul.addr %s198, 16
          %s200 = scalar_lea.hbm %s1, %s199
          %s202 = sshll.u32 %s194, 4
          %s203 = int_to_ptr.vmem [resolvable:$true] %s202
          %205 = dma.hbm_to_vmem [thread:$0]  %s200, 16, %s203, %s192
        $region24: #{tpu_custom_call.1} parent=15 // pred_fallthru
          _
        // Predicated region
        $region25: #{tpu_custom_call.1} parent=15 // pred_check
          %p206 = pneg %p115
        $region26: #{tpu_custom_call.1} parent=15 // pred_check_branch
          %208 = sbr.rel (%p206) target = $region28
        $region27: #{tpu_custom_call.1} parent=15 // pred_region
          %p209 = scmp.lt.s32.totalorder %s25, 1
          %s210 = scalar_select %p209, %s25, 1
          %p211 = scmp.lt.s32.totalorder %s26, 0
          %s212 = scalar_select %p211, %s26, 0
          %s213 = sadd.s32 %s212, %s210
          %s214 = scalar_lea.vmem %s2, %s213
        $region28: #{tpu_custom_call.1} parent=15 // pred_fallthru
          _
      $region16: #{tpu_custom_call.1} parent=5 // pred_fallthru
        _
      %p215 = scmp.le.s32.totalorder 1, %s18
      %p216 = scmp.lt.s32.totalorder %s18, 5
      %p217 = pnand %p215, %p216
      %p218 = pneg %p217
      // Predicated region
      $region29: #{tpu_custom_call.1} parent=5 // pred_check
        _
      $region30: #{tpu_custom_call.1} parent=5 // pred_check_branch
        %220 = sbr.rel (%p217) target = $region32
      $region31: #{tpu_custom_call.1} parent=5 // pred_region
        %s221 = ssub.s32 %s18, 1
        %s222 = sand.u32 %s52, 1
        %s223 = scalar_lea.sflag [#allocation4], %s222
        %s224 = sand.u32 %s52, 1
        %s225 = smul.addr %s224, 4
        %s226 = scalar_lea.vmem [#allocation3], %s225
        // Predicated region
        $region33: #{tpu_custom_call.1} parent=31 // pred_check
          %p227 = pneg %p65
        $region34: #{tpu_custom_call.1} parent=31 // pred_check_branch
          %229 = sbr.rel (%p227) target = $region36
        $region35: #{tpu_custom_call.1} parent=31 // pred_region
          %230 = dma.done %s223, 64
        $region36: #{tpu_custom_call.1} parent=31 // pred_fallthru
          _
        %s231 = sand.u32 %s80, 1
        %s232 = scalar_lea.sflag [#allocation7], %s231
        %s233 = sand.u32 %s80, 1
        %s234 = scalar_lea.vmem [#allocation6], %s233
        // Predicated region
        $region37: #{tpu_custom_call.1} parent=31 // pred_check
          %p235 = pneg %p93
        $region38: #{tpu_custom_call.1} parent=31 // pred_check_branch
          %237 = sbr.rel (%p235) target = $region40
        $region39: #{tpu_custom_call.1} parent=31 // pred_region
          %238 = dma.done %s232, 16
        $region40: #{tpu_custom_call.1} parent=31 // pred_fallthru
          _
        %s239 = sand.u32 %s52, 1
        %s240 = scalar_lea.sflag [#allocation4], %s239
        %s241 = sand.u32 %s52, 1
        %s242 = smul.addr %s241, 4
        %s243 = scalar_lea.vmem [#allocation3], %s242
        %p244 = pneg %p65
        %p245 = pneg %p62
        %s246 = sand.u32 %s80, 1
        %s247 = scalar_lea.sflag [#allocation7], %s246
        %s248 = sand.u32 %s80, 1
        %s249 = scalar_lea.vmem [#allocation6], %s248
        %p250 = pneg %p93
        %p251 = pneg %p90
        %p252 = scmp.lt.s32.totalorder %s28, 1
        %s253 = scalar_select %p252, %s28, 1
        %p254 = scmp.lt.s32.totalorder %s29, 0
        %s255 = scalar_select %p254, %s29, 0
        %s256 = sadd.s32 %s255, %s253
        %s257 = scalar_lea.vmem %s2, %s256
        %p258 = pneg %p121
        %p259 = pneg %p118
        %p260 = pneg %p149
        %p261 = pneg %p146
        %s262 = sand.u32 %s136, 1
        %s263 = scalar_lea.sflag [#allocation5], %s262
        %s264 = sand.u32 %s136, 1
        %s265 = smul.addr %s264, 4
        %s266 = scalar_lea.vmem [#allocation8], %s265
        %p267 = scmp.lt.s32.totalorder %s28, 1
        %s268 = scalar_select %p267, %s28, 1
        %p269 = scmp.lt.s32.totalorder %s29, 0
        %s270 = scalar_select %p269, %s29, 0
        %s271 = sadd.s32 %s270, %s268
        %s272 = scalar_lea.vmem %s2, %s271
        %p273 = scmp.eq.s32.totalorder %s30, 0
        // Predicated region
        $region41: #{tpu_custom_call.1} parent=31 // pred_check
          %p274 = pneg %p273
        $region42: #{tpu_custom_call.1} parent=31 // pred_check_branch
          %276 = sbr.rel (%p274) target = $region44
        $region43: #{tpu_custom_call.1} parent=31 // pred_region
          %277 = vst [vmem:[#allocation2] sm:$0xf] 0.0
        $region44: #{tpu_custom_call.1} parent=31 // pred_fallthru
          _
        %v278 = vld [vmem:[%s234] sm:$0x1]
        %v279 = vld [vmem:[%s272] sm:$0x1]
        %v280 = vfloor.f32 %v278
        %v281 = vfloor.f32 %v279
        %v282 = vsub.f32 %v278, %v280
        %v283 = vsub.f32 1.0, %v282
        %v284 = vsub.f32 %v279, %v281
        %v285 = vsub.f32 1.0, %v284
        %v286 = vcvt.f32.s32.to.zero.pseudo %v280
        %v287 = vcvt.f32.s32.to.zero.pseudo %v281
        %v288 = vadd.s32 %v286, 1
        %v289 = vadd.s32 %v287, 1
        %s290 = smul.u32 %s30, 8
        %v291 = vlaneseq
        %v292 = vshrl.u32 %v291, 7
        %v293 = vstv %s290
        %v294 = vadd.s32 %v292, %v293
        %v295 = vadd.s32 %v292, 8
        %v296 = vlaneseq
        %v297 = vshrl.u32 %v296, 7
        %v298 = vsub.s32 0, %v297
        %v299 = vrot.slane %v287, %v298
        %vm300 = vcmp.eq.s32.totalorder %v294, %v299
        %v302 = vlaneseq
        %v303 = vshrl.u32 %v302, 7
        %v304 = vsub.s32 0, %v303
        %v305 = vrot.slane %v285, %v304
        %v307 = vsel %vm300, %v305, 0.0
        %v308 = vlaneseq
        %v309 = vshrl.u32 %v308, 7
        %v310 = vsub.s32 0, %v309
        %v311 = vrot.slane %v289, %v310
        %vm312 = vcmp.eq.s32.totalorder %v294, %v311
        %v314 = vlaneseq
        %v315 = vshrl.u32 %v314, 7
        %v316 = vsub.s32 0, %v315
        %v317 = vrot.slane %v284, %v316
        %v319 = vsel %vm312, %v317, 0.0
        %v320 = vadd.f32 %v307, %v319
        %v321 = vlaneseq
        %v322 = vshrl.u32 %v321, 7
        %v323 = vsub.s32 0, %v322
        %v324 = vrot.slane %v286, %v323
        %vm325 = vcmp.eq.s32.totalorder %v292, %v324
        %vm326 = vcmp.eq.s32.totalorder %v295, %v324
        %v328 = vlaneseq
        %v329 = vshrl.u32 %v328, 7
        %v330 = vsub.s32 0, %v329
        %v331 = vrot.slane %v283, %v330
        %v333 = vsel %vm325, %v331, 0.0
        %v334 = vsel %vm326, %v331, 0.0
        %v335 = vlaneseq
        %v336 = vshrl.u32 %v335, 7
        %v337 = vsub.s32 0, %v336
        %v338 = vrot.slane %v288, %v337
        %vm339 = vcmp.eq.s32.totalorder %v292, %v338
        %vm340 = vcmp.eq.s32.totalorder %v295, %v338
        %v342 = vlaneseq
        %v343 = vshrl.u32 %v342, 7
        %v344 = vsub.s32 0, %v343
        %v345 = vrot.slane %v282, %v344
        %v347 = vsel %vm339, %v345, 0.0
        %v348 = vsel %vm340, %v345, 0.0
        %v349 = vadd.f32 %v333, %v347
        %v350 = vadd.f32 %v334, %v348
        %v352 = vcombine.high %v320, %v320
        %v354 = vunpack.c.l.s4 1966171168
        %v355 = vunpack.c.0.s8 %v354
        %v356 = vlaneseq
        %v357 = vshrl.u32 %v356, 7
        %v358 = vsub.s32 %v355, %v357
        %v359 = vrot.slane %v320, %v358
        %v361 = vunpack.c.l.s4 1966171168
        %v362 = vunpack.c.0.s8 %v361
        %v363 = vlaneseq
        %v364 = vshrl.u32 %v363, 7
        %v365 = vsub.s32 %v362, %v364
        %v366 = vrot.slane %v352, %v365
        %v367 = vcombine.high %v359, %v359
        %v368 = vcombine.high %v366, %v366
        %v370 = vunpack.c.l.s4 1966171168
        %v371 = vunpack.c.0.s8 %v370
        %v372 = vlaneseq
        %v373 = vshrl.u32 %v372, 7
        %v374 = vsub.s32 %v371, %v373
        %v375 = vrot.slane %v359, %v374
        %v377 = vunpack.c.l.s4 1966171168
        %v378 = vunpack.c.0.s8 %v377
        %v379 = vlaneseq
        %v380 = vshrl.u32 %v379, 7
        %v381 = vsub.s32 %v378, %v380
        %v382 = vrot.slane %v366, %v381
        %v384 = vunpack.c.l.s4 1966171168
        %v385 = vunpack.c.0.s8 %v384
        %v386 = vlaneseq
        %v387 = vshrl.u32 %v386, 7
        %v388 = vsub.s32 %v385, %v387
        %v389 = vrot.slane %v367, %v388
        %v391 = vunpack.c.l.s4 1966171168
        %v392 = vunpack.c.0.s8 %v391
        %v393 = vlaneseq
        %v394 = vshrl.u32 %v393, 7
        %v395 = vsub.s32 %v392, %v394
        %v396 = vrot.slane %v368, %v395
        %v397 = vcombine.high %v375, %v375
        %v398 = vcombine.high %v382, %v382
        %v399 = vcombine.high %v389, %v389
        %v400 = vcombine.high %v396, %v396
        %v401 = vlaneseq
        %v402 = vshrl.u32 %v401, 7
        %v403 = vsub.s32 0, %v402
        %v404 = vrot.slane %v375, %v403
        %v405 = vlaneseq
        %v406 = vshrl.u32 %v405, 7
        %v407 = vsub.s32 0, %v406
        %v408 = vrot.slane %v389, %v407
        %v409 = vlaneseq
        %v410 = vshrl.u32 %v409, 7
        %v411 = vsub.s32 0, %v410
        %v412 = vrot.slane %v397, %v411
        %v413 = vlaneseq
        %v414 = vshrl.u32 %v413, 7
        %v415 = vsub.s32 0, %v414
        %v416 = vrot.slane %v399, %v415
        %v417 = vlaneseq
        %v418 = vshrl.u32 %v417, 7
        %v419 = vsub.s32 0, %v418
        %v420 = vrot.slane %v382, %v419
        %v421 = vlaneseq
        %v422 = vshrl.u32 %v421, 7
        %v423 = vsub.s32 0, %v422
        %v424 = vrot.slane %v396, %v423
        %v425 = vlaneseq
        %v426 = vshrl.u32 %v425, 7
        %v427 = vsub.s32 0, %v426
        %v428 = vrot.slane %v398, %v427
        %v429 = vlaneseq
        %v430 = vshrl.u32 %v429, 7
        %v431 = vsub.s32 0, %v430
        %v432 = vrot.slane %v400, %v431
        %v441 = vmul.f32 %v404, %v349
        %v442 = vmul.f32 %v404, %v350
        %v443 = vmul.f32 %v408, %v349
        %v444 = vmul.f32 %v408, %v350
        %v445 = vmul.f32 %v412, %v349
        %v446 = vmul.f32 %v412, %v350
        %v447 = vmul.f32 %v416, %v349
        %v448 = vmul.f32 %v416, %v350
        %v449 = vmul.f32 %v420, %v349
        %v450 = vmul.f32 %v420, %v350
        %v451 = vmul.f32 %v424, %v349
        %v452 = vmul.f32 %v424, %v350
        %v453 = vmul.f32 %v428, %v349
        %v454 = vmul.f32 %v428, %v350
        %v455 = vmul.f32 %v432, %v349
        %v456 = vmul.f32 %v432, %v350
        %v457 = vld [vmem:[%s226] sm:$0xf]
        %v458 = vld [vmem:[#allocation2] sm:$0xf]
        %459 = vmatprep.subr.mxu0 0.0
        %460 = vmatpush1.msra.mxu0 %v456
        %461 = vmatprep.subr.mxu0 0.0
        %462 = vmatpush1.msra.mxu0 %v455
        %463 = vmatprep.subr.mxu0 0.0
        %464 = vmatpush1.msra.mxu0 %v454
        %465 = vmatprep.subr.mxu0 0.0
        %466 = vmatpush1.msra.mxu0 %v453
        %467 = vmatprep.subr.mxu0 0.0
        %468 = vmatpush1.msra.mxu0 %v452
        %469 = vmatprep.subr.mxu0 0.0
        %470 = vmatpush1.msra.mxu0 %v451
        %471 = vmatprep.subr.mxu0 0.0
        %472 = vmatpush1.msra.mxu0 %v450
        %473 = vmatprep.subr.mxu0 0.0
        %474 = vmatpush1.msra.mxu0 %v449
        %475 = vmatprep.subr.mxu0 0.0
        %476 = vmatpush1.msra.mxu0 %v448
        %477 = vmatprep.subr.mxu0 0.0
        %478 = vmatpush1.msra.mxu0 %v447
        %479 = vmatprep.subr.mxu0 0.0
        %480 = vmatpush1.msra.mxu0 %v446
        %481 = vmatprep.subr.mxu0 0.0
        %482 = vmatpush1.msra.mxu0 %v445
        %483 = vmatprep.subr.mxu0 0.0
        %484 = vmatpush1.msra.mxu0 %v444
        %485 = vmatprep.subr.mxu0 0.0
        %486 = vmatpush1.msra.mxu0 %v443
        %487 = vmatprep.subr.mxu0 0.0
        %488 = vmatpush1.msra.mxu0 %v442
        %489 = vmatprep.subr.mxu0 0.0
        %490 = vmatpush1.msra.mxu0 %v441
        %491 = vmatprep.subr.mxu0 0.0
        %492 = vmatpush2.msra.mxu0 0.0
        %493 = vmatprep.subr.mxu0 0.0
        %494 = vmatpush2.msra.mxu0 0.0
        %495 = vmatprep.subr.mxu0 0.0
        %496 = vmatpush2.msra.mxu0 0.0
        %497 = vmatprep.subr.mxu0 0.0
        %498 = vmatpush2.msra.mxu0 0.0
        %499 = vmatprep.subr.mxu0 0.0
        %500 = vmatpush2.msra.mxu0 0.0
        %501 = vmatprep.subr.mxu0 0.0
        %502 = vmatpush2.msra.mxu0 0.0
        %503 = vmatprep.subr.mxu0 0.0
        %504 = vmatpush2.msra.mxu0 0.0
        %505 = vmatprep.subr.mxu0 0.0
        %506 = vmatpush2.msra.mxu0 0.0
        %507 = vmatprep.subr.mxu0 0.0
        %508 = vmatpush2.msra.mxu0 0.0
        %509 = vmatprep.subr.mxu0 0.0
        %510 = vmatpush2.msra.mxu0 0.0
        %511 = vmatprep.subr.mxu0 0.0
        %512 = vmatpush2.msra.mxu0 0.0
        %513 = vmatprep.subr.mxu0 0.0
        %514 = vmatpush2.msra.mxu0 0.0
        %515 = vmatprep.subr.mxu0 0.0
        %516 = vmatpush2.msra.mxu0 0.0
        %517 = vmatprep.subr.mxu0 0.0
        %518 = vmatpush2.msra.mxu0 0.0
        %519 = vmatprep.subr.mxu0 0.0
        %520 = vmatpush2.msra.mxu0 0.0
        %521 = vmatprep.subr.mxu0 0.0
        %522 = vmatpush2.msra.mxu0 0.0
        %523 = vmatprep.mubr.f32.mxu0 0.0
        %524 = vmatmul.mubr.f32.gmra.mxu0 %v457
        %v525 = vpop.f32.mrf.mxu0
        %v526 = vadd.f32 0.0, %v525
        %v527 = vpop.f32.mrf.mxu0
        %528 = vdwg.mxu0
        %v529 = vadd.f32 %v458, %v526
        %530 = vst [vmem:[#allocation2] sm:$0xf] %v529
        %p531 = scmp.eq.s32.totalorder %s30, 1
        // Predicated region
        $region45: #{tpu_custom_call.1} parent=31 // pred_check
          %p532 = pneg %p531
        $region46: #{tpu_custom_call.1} parent=31 // pred_check_branch
          %534 = sbr.rel (%p532) target = $region48
        $region47: #{tpu_custom_call.1} parent=31 // pred_region
          %v535 = vld [vmem:[#allocation2] sm:$0xf]
          %536 = vst [vmem:[%s266] sm:$0xf] %v535
        $region48: #{tpu_custom_call.1} parent=31 // pred_fallthru
          _
        %s537 = sand.u32 %s136, 1
        %s538 = scalar_lea.sflag [#allocation5], %s537
        %s539 = sand.u32 %s136, 1
        %s540 = smul.addr %s539, 4
        %s541 = scalar_lea.vmem [#allocation8], %s540
        // Predicated region
        $region49: #{tpu_custom_call.1} parent=31 // pred_check
          %p542 = pneg %p146
        $region50: #{tpu_custom_call.1} parent=31 // pred_check_branch
          %544 = sbr.rel (%p542) target = $region52
        $region51: #{tpu_custom_call.1} parent=31 // pred_region
          %s546 = ssub.s32 64, 64
          %547 = vsyncadd %s538, %s546
          %s548 = sadd.s32 %s29, %s28
          %s549 = smul.addr %s548, 64
          %s550 = scalar_lea.hbm %s3, %s549
          %s552 = sshll.u32 %s541, 4
          %s553 = int_to_ptr.vmem [resolvable:$true] %s552
          %555 = dma.vmem_to_hbm [thread:$0]  %s553, 64, %s550, %s538
        $region52: #{tpu_custom_call.1} parent=31 // pred_fallthru
          _
      $region32: #{tpu_custom_call.1} parent=5 // pred_fallthru
        _
      %p556 = scmp.le.s32.totalorder 2, %s18
      // Predicated region
      $region53: #{tpu_custom_call.1} parent=5 // pred_check
        %p557 = pneg %p556
      $region54: #{tpu_custom_call.1} parent=5 // pred_check_branch
        %559 = sbr.rel (%p557) target = $region56
      $region55: #{tpu_custom_call.1} parent=5 // pred_region
        %s560 = ssub.s32 %s18, 2
        // Predicated region
        $region57: #{tpu_custom_call.1} parent=55 // pred_check
          %p561 = pneg %p152
        $region58: #{tpu_custom_call.1} parent=55 // pred_check_branch
          %563 = sbr.rel (%p561) target = $region60
        $region59: #{tpu_custom_call.1} parent=55 // pred_region
          %s564 = sand.u32 %s137, 1
          %s565 = scalar_lea.sflag [#allocation5], %s564
          %s566 = sand.u32 %s137, 1
          %s567 = smul.addr %s566, 4
          %s568 = scalar_lea.vmem [#allocation8], %s567
          %569 = dma.done %s565, 64
        $region60: #{tpu_custom_call.1} parent=55 // pred_fallthru
          _
      $region56: #{tpu_custom_call.1} parent=5 // pred_fallthru
        _
    $region6: #{tpu_custom_call.1} parent=1 // loop_footer
      %s22 = sadd.s32 1, %s18
    $region7: #{tpu_custom_call.1} parent=1 // loop_footer_branch
      %17 = sbr.rel target = $region3
    $region8: #{tpu_custom_call.1} parent=1 // loop_exit
      _
    %570 = vsyncpa [#allocation4], 1
    %s571 = scalar_lea.sflag [#allocation4], 1
    %572 = vsyncpa %s571, 1
    %573 = vsyncpa [#allocation7], 1
    %s574 = scalar_lea.sflag [#allocation7], 1
    %575 = vsyncpa %s574, 1
    %576 = vsyncpa [#allocation5], 1
    %s577 = scalar_lea.sflag [#allocation5], 1
    %578 = vsyncpa %s577, 1

</llo_original>
